<compile_context>
chip_gen: v5e
topology: v5e:2x2
jax: 0.10.0
libtpu: 0.0.40
codegen_flags: <defaults>
</compile_context>

<pallas_src>
import functools

import jax
import jax.numpy as jnp
from jax.experimental import pallas as pl
from jax.experimental.pallas import tpu as pltpu


def _conv1d_valid_kernel(w_ref, x_ref, o_ref, *, taps, out_len):
    # w_ref: SMEM (taps,) f32 weight taps
    # x_ref: VMEM (row_block, L) input rows
    # o_ref: VMEM (row_block, out_len) output rows
    acc = w_ref[0] * x_ref[:, 0:out_len]
    for k in range(1, taps):                      # static unroll over kernel taps
        acc = acc + w_ref[k] * x_ref[:, k:k + out_len]
    o_ref[...] = acc


def conv1d_valid(x, weight, *, row_block=None):
    """Valid (no padding, stride 1) Conv1d with a single in/out channel, no bias.

    x:      (N, 1, L) float32   (PyTorch NCL layout)
    weight: (1, 1, K) float32   (PyTorch Conv1d weight layout)
    returns (N, 1, L - K + 1) float32
    """
    N, C, L = x.shape
    assert C == 1 and weight.shape[0] == 1 and weight.shape[1] == 1
    K = weight.shape[2]
    L_out = L - K + 1

    # Lane-dense slab: rows on sublanes, length on lanes.
    rows = N * C
    x2 = x.reshape(rows, L)
    w = weight.reshape(K).astype(x.dtype)

    if row_block is None:
        row_block = rows if rows <= 256 else 256   # full rows when small; 256-row tiles when large
    grid = (pl.cdiv(rows, row_block),)

    kernel = functools.partial(_conv1d_valid_kernel, taps=K, out_len=L_out)

    out2 = pl.pallas_call(
        kernel,
        out_shape=jax.ShapeDtypeStruct((rows, L_out), x.dtype),
        grid_spec=pltpu.PrefetchScalarGridSpec(
            num_scalar_prefetch=0,
            grid=grid,
            in_specs=[
                # Weight taps: one tiny SMEM-resident parameter array.
                pl.BlockSpec(memory_space=pltpu.MemorySpace.SMEM),
                # Input rows: tile over rows, keep full length per block so the
                # +k shift is an in-tile lane slice.
                pl.BlockSpec((row_block, L), lambda i: (i, 0)),
            ],
            out_specs=pl.BlockSpec((row_block, L_out), lambda i: (i, 0)),
        ),
        compiler_params=pltpu.CompilerParams(
            dimension_semantics=("parallel",),
        ),
    )(w, x2)

    return out2.reshape(N, 1, L_out)


if __name__ == "__main__":
    key = jax.random.PRNGKey(0)

    # Input consistent with nn.Conv1d(1, 1, kernel_size=2): (batch=2, channels=1, length=16)
    x = jax.random.normal(key, (2, 1, 16), dtype=jnp.float32)

    # init_weights(): weight = ones * 2.0, shape (out_ch=1, in_ch=1, k=2); bias=False.
    weight = jnp.full((1, 1, 2), 2.0, dtype=jnp.float32)

    y = conv1d_valid(x, weight)
    y = jax.block_until_ready(y)

    # Plain-JAX reference: valid 1-D cross-correlation (PyTorch Conv1d semantics).
    y_ref = weight[0, 0, 0] * x[:, :, :-1] + weight[0, 0, 1] * x[:, :, 1:]

    assert y.shape == (2, 1, 15), y.shape
    assert jnp.allclose(y, y_ref, atol=1e-6), "mismatch vs reference"
    print("KERNEL_OK")
</pallas_src>

<mosaic_0001>
module attributes {stable_mosaic.version = 11 : i64} {
  func.func @_conv1d_valid_kernel(%arg0: i32, %arg1: memref<2xf32, #tpu.memory_space<smem>>, %arg2: memref<2x16xf32, #tpu.memory_space<vmem>>, %arg3: memref<2x15xf32, #tpu.memory_space<vmem>>) attributes {dimension_semantics = [#tpu.dimension_semantics<parallel>], iteration_bounds = array<i64: 1>, scalar_prefetch = 0 : i64, scratch_operands = 0 : i64, tpu.core_type = #tpu.core_type<tc>, window_params = [{transform_indices = @transform_0, window_bounds = array<i64: 2>}, {transform_indices = @transform_1, window_bounds = array<i64: 2, 16>}, {transform_indices = @transform_2, window_bounds = array<i64: 2, 15>}]} {
    %c0 = arith.constant 0 : index
    %0 = memref.load %arg1[%c0] : memref<2xf32, #tpu.memory_space<smem>>
    %c0_0 = arith.constant 0 : index
    %c0_1 = arith.constant 0 : index
    %1 = vector.load %arg2[%c0_0, %c0_1] : memref<2x16xf32, #tpu.memory_space<vmem>>, vector<2x15xf32>
    %2 = vector.broadcast %0 : f32 to vector<2x15xf32>
    %3 = arith.mulf %2, %1 : vector<2x15xf32>
    %c1 = arith.constant 1 : index
    %4 = memref.load %arg1[%c1] : memref<2xf32, #tpu.memory_space<smem>>
    %c0_2 = arith.constant 0 : index
    %c1_3 = arith.constant 1 : index
    %5 = vector.load %arg2[%c0_2, %c1_3] : memref<2x16xf32, #tpu.memory_space<vmem>>, vector<2x15xf32>
    %6 = vector.broadcast %4 : f32 to vector<2x15xf32>
    %7 = arith.mulf %6, %5 : vector<2x15xf32>
    %8 = arith.addf %3, %7 : vector<2x15xf32>
    %c0_4 = arith.constant 0 : index
    %c0_5 = arith.constant 0 : index
    %9 = vector.load %arg3[%c0_4, %c0_5] : memref<2x15xf32, #tpu.memory_space<vmem>>, vector<2x15xf32>
    tpu.vector_store %arg3[%c0_4, %c0_5], %8 {strides = array<i32>} : memref<2x15xf32, #tpu.memory_space<vmem>>, vector<2x15xf32>,
    return
  }
  func.func @transform_0(%arg0: i32) -> i32 {
    %c0_i32 = arith.constant 0 : i32
    %c0_i32_0 = arith.constant 0 : i32
    return %c0_i32 : i32
  }
  func.func @transform_1(%arg0: i32) -> (i32, i32) {
    %c0_i32 = arith.constant 0 : i32
    %c0_i32_0 = arith.constant 0 : i32
    return %arg0, %c0_i32 : i32, i32
  }
  func.func @transform_2(%arg0: i32) -> (i32, i32) {
    %c0_i32 = arith.constant 0 : i32
    %c0_i32_0 = arith.constant 0 : i32
    return %arg0, %c0_i32 : i32, i32
  }
}

</mosaic_0001>

<llo_original>
// kernel: tpu_custom_call.1
$region0: #{tpu_custom_call.1}
  #allocation0 [shape = 'u32[]', space=smem, size = 0x4, offset = 0x4, fixed_abs, tag = 'smem constant byte address 0x4 - core index']
  #allocation1 [shape = 'u32[72,128]{1,0:T(1,128)}', space=vmem, size = 0x9000, scoped, tag = 'internal scratch']
  %s0 = inlined_call_operand.hbm [shape: f32[2], index: 0, kind: input, shape index: {}]
  %s1 = inlined_call_operand.hbm [shape: f32[2,16], index: 1, kind: input, shape index: {}]
  %s2 = inlined_call_operand.hbm [shape: f32[2,15], index: 2, kind: output, shape index: {}]
  %s3 = sld [smem:[#allocation0]]
  $region26: #{tpu_custom_call.1} parent=0
    _
  %s5 = ssub.s32 1, %s3
  %s6 = scalar_select 0, %s5, %s3
  $region1: #{tpu_custom_call.1} parent=0
    #allocation2 [shape = 'u8[512]{0}', space=smem, size = 0x200, scoped, tag = 'input window, operand 0, single buffered']
    #allocation3 [shape = 's32[1]{0}', space=sflag, size = 0x4, scoped, tag = 'scoped memory for tpu_custom_call.1']
    #allocation4 [shape = 's32[1]{0}', space=sflag, size = 0x4, scoped, tag = 'scoped memory for tpu_custom_call.1']
    #allocation5 [shape = 's32[1]{0}', space=sflag, size = 0x4, scoped, tag = 'scoped memory for tpu_custom_call.1']
    #allocation6 [shape = 'u8[1024]{0}', space=vmem, size = 0x400, scoped, tag = 'input window, operand 1, single buffered']
    #allocation7 [shape = 'u8[1024]{0}', space=vmem, size = 0x400, scoped, tag = 'output window, operand 0, single buffered']
    %7 = vsyncpa [#allocation5], 0
    %8 = vsyncpa [#allocation3], 0
    %9 = vsyncpa [#allocation4], 0
    // Predicated region
    $region2: #{tpu_custom_call.1} parent=1 // pred_check
      _
    $region3: #{tpu_custom_call.1} parent=1 // pred_check_branch
      %11 = sbr.rel (0) target = $region5
    $region4: #{tpu_custom_call.1} parent=1 // pred_region
      %13 = vsyncadd [#allocation5], 0
      %s15 = sshll.u32 %s0, 4
      %s16 = int_to_ptr.hbm [resolvable:$true] %s15
      %18 = dma.hbm_to_smem %s16, 16, [#allocation2], [#allocation5]
    $region5: #{tpu_custom_call.1} parent=1 // pred_fallthru
      _
    // Predicated region
    $region6: #{tpu_custom_call.1} parent=1 // pred_check
      _
    $region7: #{tpu_custom_call.1} parent=1 // pred_check_branch
      %20 = sbr.rel (0) target = $region9
    $region8: #{tpu_custom_call.1} parent=1 // pred_region
      %22 = vsyncadd [#allocation3], 0
      %s24 = sshll.u32 %s1, 4
      %s25 = int_to_ptr.hbm [resolvable:$true] %s24
      %s26 = sshll.u32 [#allocation6], 4
      %s27 = int_to_ptr.vmem [resolvable:$true] %s26
      %29 = dma.hbm_to_vmem [thread:$0]  %s25, 32, %s27, [#allocation3]
    $region9: #{tpu_custom_call.1} parent=1 // pred_fallthru
      _
    // Predicated region
    $region10: #{tpu_custom_call.1} parent=1 // pred_check
      _
    $region11: #{tpu_custom_call.1} parent=1 // pred_check_branch
      %31 = sbr.rel (0) target = $region13
    $region12: #{tpu_custom_call.1} parent=1 // pred_region
      %33 = dma.done [#allocation5], 16
    $region13: #{tpu_custom_call.1} parent=1 // pred_fallthru
      _
    // Predicated region
    $region14: #{tpu_custom_call.1} parent=1 // pred_check
      _
    $region15: #{tpu_custom_call.1} parent=1 // pred_check_branch
      %35 = sbr.rel (0) target = $region17
    $region16: #{tpu_custom_call.1} parent=1 // pred_region
      %37 = dma.done [#allocation3], 32
    $region17: #{tpu_custom_call.1} parent=1 // pred_fallthru
      _
    %38 = sfence
    %s39 = sld [smem:[#allocation2]]
    %v40 = vld [vmem:[#allocation6] sm:$0x3]
    %v41 = vstv %s39
    %v42 = vmul.f32 %v41, %v40
    %s43 = sld [smem:[#allocation2 + $0x1]]
    %v44 = vstv %s43
    %v45 = vmul.f32 %v44, %v40
    %47 = vrot.lane.b32.xlu0 %v45, 127
    %v48 = vpop.permute.xlu0 %47
    %v50 = vadd.f32 %v42, %v48
    %vm51 = vcmask 115712
    %52 = vst.msk [vmem:[#allocation7] sm:$0x3] %vm51, %v50
    // Predicated region
    $region18: #{tpu_custom_call.1} parent=1 // pred_check
      _
    $region19: #{tpu_custom_call.1} parent=1 // pred_check_branch
      %54 = sbr.rel (0) target = $region21
    $region20: #{tpu_custom_call.1} parent=1 // pred_region
      %56 = vsyncadd [#allocation4], 0
      %s58 = sshll.u32 [#allocation7], 4
      %s59 = int_to_ptr.vmem [resolvable:$true] %s58
      %s60 = sshll.u32 %s2, 4
      %s61 = int_to_ptr.hbm [resolvable:$true] %s60
      %63 = dma.vmem_to_hbm [thread:$0]  %s59, 32, %s61, [#allocation4]
    $region21: #{tpu_custom_call.1} parent=1 // pred_fallthru
      _
    // Predicated region
    $region22: #{tpu_custom_call.1} parent=1 // pred_check
      _
    $region23: #{tpu_custom_call.1} parent=1 // pred_check_branch
      %65 = sbr.rel (0) target = $region25
    $region24: #{tpu_custom_call.1} parent=1 // pred_region
      %67 = dma.done [#allocation4], 32
    $region25: #{tpu_custom_call.1} parent=1 // pred_fallthru
      _
    %68 = vsyncpa [#allocation3], 1
    %69 = vsyncpa [#allocation4], 1
    %70 = vsyncpa [#allocation5], 1

</llo_original>
